<compile_context>
chip_gen: v6e
topology: v6e:2x2x1
jax: 0.10.0
libtpu: 0.0.40
codegen_flags: <defaults>
</compile_context>

<pallas_src>
import jax
import jax.numpy as jnp
from jax.experimental import pallas as pl
from jax.experimental.pallas import tpu as pltpu

LANES = 128  # TPU lane width; every hidden activation fits in one 128-lane tile


def _round_up(n, m):
    return -(-n // m) * m


# --------------------------------------------------------------------------- kernel
def _make_estimator_kernel(row_bounds, d_in):
    """Build the fused-MLP kernel.

    row_bounds: static (row_start, row_stop) slices of the packed weight slab, one
    per fused layer in execution order (trunk layers, then fused e|v head).
    Layer k uses bias row k of the bias slab.  d_in is the true input feature width.
    """
    n_layers = len(row_bounds)
    d_in_rounded = row_bounds[0][1] - row_bounds[0][0]  # sublane-rounded fan-in

    def kernel(x_ref, w_ref, b_ref, fs_ref, out_ref):
        # x_ref : [TB, d_in]                  batch tile (original dtype, e.g. f32)
        # w_ref : [sum(rows), 128]            lane-padded packed weights (VMEM-resident)
        # b_ref : [round_up(n_layers,8), 128] lane-padded packed biases (f32)
        # fs_ref: [3] in SMEM                 folded fs affine: (a, b, c)
        # out_ref:[TB, 8]                     lanes 0/1/2 = x_e / x_v / x_iv
        h = x_ref[...]
        if d_in < d_in_rounded:  # static: pad fan-in with zeros on-chip (no HBM pass)
            pad = jnp.zeros((h.shape[0], d_in_rounded - d_in), h.dtype)
            h = jnp.concatenate([h, pad], axis=1)

        for k, (lo, hi) in enumerate(row_bounds):
            w = w_ref[lo:hi, :]                               # static slab slice
            z = jnp.dot(h.astype(w.dtype), w,                 # bf16/f32 MXU operands
                        preferred_element_type=jnp.float32)   # f32 accumulate
            z = z + b_ref[k:k + 1, :]                         # bias stays f32
            # relu on every layer except the final fused head layer.
            # Dropout == identity in eval mode.
            h = jnp.maximum(z, 0.0) if k < n_layers - 1 else z

        # h: [TB,128] f32; lane 0 = z_e, lane 1 = z_v, all other lanes exact zeros.
        z_e = h[:, 0:1]                                       # cheap static lane slices
        z_v = h[:, 1:2]

        x_e = jax.nn.sigmoid(z_e)
        # numerically stable softplus (torch.nn.Softplus, beta=1)
        x_v = jnp.maximum(z_v, 0.0) + jnp.log1p(jnp.exp(-jnp.abs(z_v)))

        # Folded fs head: sigmoid(cat([x_e, x_v]) @ Wfs0 @ Wfs1 + bfs0 @ Wfs1 + bfs1)
        #              == sigmoid(fa * x_e + fb * x_v + fc)
        fa = fs_ref[0]
        fb = fs_ref[1]
        fc = fs_ref[2]
        x_iv = jax.nn.sigmoid(fa * x_e + fb * x_v + fc)

        # Single narrow [TB, 8] store (one masked vst per row-group; negligible).
        lane_out = jax.lax.broadcasted_iota(jnp.int32, out_ref.shape, 1)
        out = jnp.where(lane_out == 0, x_e,
              jnp.where(lane_out == 1, x_v,
              jnp.where(lane_out == 2, x_iv, 0.0)))
        out_ref[...] = out.astype(out_ref.dtype)

    return kernel


# ----------------------------------------------------------------- parameter packing
def pack_params(params, compute_dtype=jnp.bfloat16):
    """Fuse heads, fold fs, and pack all weights/biases into consolidated slabs.

    compute_dtype defaults to bf16: single-pass MXU operands on all generations
    (f32 operands lower to ~3x multi-pass bf16 work); accumulation stays f32.
    """
    trunk = params["trunk"]
    (we0, be0), (we1, be1), (we2, be2) = params["e"]
    (wv0, bv0), (wv1, bv1), (wv2, bv2) = params["v"]
    (wfs0, bfs0), (wfs1, bfs1) = params["fs"]

    def block_diag(a, b):
        out = jnp.zeros((a.shape[0] + b.shape[0], a.shape[1] + b.shape[1]), jnp.float32)
        out = out.at[:a.shape[0], :a.shape[1]].set(a)
        out = out.at[a.shape[0]:, a.shape[1]:].set(b)
        return out

    # Fuse e|v heads: layer0 concat along outputs, layers 1/2 block-diagonal.
    fused_head = [
        (jnp.concatenate([we0, wv0], axis=1), jnp.concatenate([be0, bv0], axis=1)),
        (block_diag(we1, wv1), jnp.concatenate([be1, bv1], axis=1)),
        (block_diag(we2, wv2), jnp.concatenate([be2, bv2], axis=1)),
    ]
    layers = list(trunk) + fused_head
    n_layers = len(layers)
    for k, (w, _) in enumerate(layers):
        assert w.shape[1] <= LANES, "hidden width must fit in one 128-lane tile"
        assert k == 0 or w.shape[0] <= LANES, "hidden fan-in must fit in one tile"

    # Fold fs: Linear(2,8) -> Linear(8,1), no activation in between.
    w_fs = wfs0 @ wfs1                       # [2, 1]
    b_fs = bfs0 @ wfs1 + bfs1                # [1, 1]
    fs_vec = jnp.concatenate([w_fs[:, 0], b_fs[:, 0]]).astype(jnp.float32)   # [3]

    # Pack weights into one lane-padded slab; biases into another.
    # First block's rows rounded to the dtype's sublane packing (8 f32 / 16 bf16)
    # so every later slab slice stays tile-aligned; padded rows/lanes are exact zeros.
    d_in = layers[0][0].shape[0]
    sub = 8 * (4 // jnp.dtype(compute_dtype).itemsize)
    r0 = _round_up(d_in, sub)
    blocks, row_bounds, row = [], [], 0
    for k, (w, _) in enumerate(layers):
        rows = r0 if k == 0 else LANES
        blk = jnp.zeros((rows, LANES), jnp.float32)
        blk = blk.at[:w.shape[0], :w.shape[1]].set(w)
        blocks.append(blk)
        row_bounds.append((row, row + rows))
        row += rows
    w_slab = jnp.concatenate(blocks, axis=0).astype(compute_dtype)

    b_rows = _round_up(n_layers, 8)
    b_slab = jnp.zeros((b_rows, LANES), jnp.float32)
    for k, (_, b) in enumerate(layers):
        b_slab = b_slab.at[k, :b.shape[1]].set(b[0])

    return {
        "w_slab": w_slab,
        "b_slab": b_slab,
        "fs": fs_vec,
        "row_bounds": tuple(row_bounds),
        "d_in": d_in,
    }


# ------------------------------------------------------------------------- wrapper
def estimator_forward(x, packed, block_b=4096):
    w_slab, b_slab, fs_vec = packed["w_slab"], packed["b_slab"], packed["fs"]
    row_bounds, d_in = packed["row_bounds"], packed["d_in"]

    B, D = x.shape
    assert D == d_in, "input feature width must match packed params"

    # Tile selection. No wrapper-side astype/pad: the ragged last block is handled
    # by Pallas masked partial-block loads/stores, and the dtype cast happens on-chip.
    if B <= 8:
        TB = B                                               # single full-batch block
    else:
        # >= 2 grid steps so ("parallel",) shards the batch across v7x's 2 TCs;
        # each tile a multiple of 8 sublanes, capped to keep v5e VMEM comfortable.
        TB = min(block_b, _round_up(pl.cdiv(B, 2), 8))
    grid = (pl.cdiv(B, TB),)

    kernel = _make_estimator_kernel(row_bounds, d_in)

    total_rows = row_bounds[-1][1]
    cost = pl.CostEstimate(
        flops=int(2 * B * total_rows * LANES),
        transcendentals=int(5 * B),
        bytes_accessed=int(B * D * x.dtype.itemsize + B * 8 * 4
                           + w_slab.size * w_slab.dtype.itemsize
                           + b_slab.size * b_slab.dtype.itemsize),
    )

    out = pl.pallas_call(
        kernel,
        out_shape=jax.ShapeDtypeStruct((B, 8), jnp.float32),
        grid=grid,
        in_specs=[
            pl.BlockSpec((TB, D), lambda i: (i, 0)),          # x: pipelined batch tiles
            pl.BlockSpec(w_slab.shape, lambda i: (0, 0)),     # weight slab, VMEM-resident
            pl.BlockSpec(b_slab.shape, lambda i: (0, 0)),     # bias slab, VMEM-resident
            pl.BlockSpec(memory_space=pltpu.MemorySpace.SMEM),  # folded fs scalars
        ],
        out_specs=pl.BlockSpec((TB, 8), lambda i: (i, 0)),
        compiler_params=pltpu.CompilerParams(
            dimension_semantics=("parallel",)),               # v7x: shard batch over 2 TCs
        cost_estimate=cost,
    )(x, w_slab, b_slab, fs_vec)

    return out[:, 0:1], out[:, 1:2], out[:, 2:3]


# ----------------------------------------------------------- params + pure-JAX reference
def make_params(key, embedding_dim=32, est_dim=64, n_fcn_layers=2):
    """Deterministic init mimicking torch.nn.Linear default (U[-1/sqrt(fan_in), ..])."""

    def linear_init(k, fan_in, fan_out):
        k1, k2 = jax.random.split(k)
        bound = 1.0 / jnp.sqrt(fan_in)
        w = jax.random.uniform(k1, (fan_in, fan_out), jnp.float32, -bound, bound)
        b = jax.random.uniform(k2, (1, fan_out), jnp.float32, -bound, bound)
        return w, b

    keys = jax.random.split(key, 16)
    ki = iter(keys)

    dims = [embedding_dim, est_dim]
    d = est_dim
    for i in range(n_fcn_layers - 1):
        d = d // 4 if i == 0 else d // 2
        dims.append(d)
    trunk = [linear_init(next(ki), dims[i], dims[i + 1]) for i in range(len(dims) - 1)]

    def head(d0):
        ls, dd = [], d0
        for i in range(3):
            out = 1 if i == 2 else dd // 2
            ls.append(linear_init(next(ki), dd, out))
            dd = out if i == 2 else dd // 2
        return ls

    e_head = head(d)
    v_head = head(d)
    wfs0, bfs0 = linear_init(next(ki), 2, 8)
    wfs1, bfs1 = linear_init(next(ki), 8, 1)

    return {"trunk": trunk, "e": e_head, "v": v_head,
            "fs": ((wfs0, bfs0), (wfs1, bfs1))}


def estimator_reference(x, params):
    def lin(h, w, b):
        return h @ w + b

    (w0, b0), (w1, b1) = params["trunk"]
    h = jax.nn.relu(lin(x, w0, b0))
    h = jax.nn.relu(lin(h, w1, b1))

    (we0, be0), (we1, be1), (we2, be2) = params["e"]
    he = jax.nn.relu(lin(h, we0, be0))
    he = jax.nn.relu(lin(he, we1, be1))
    x_e = jax.nn.sigmoid(lin(he, we2, be2))

    (wv0, bv0), (wv1, bv1), (wv2, bv2) = params["v"]
    hv = jax.nn.relu(lin(h, wv0, bv0))
    hv = jax.nn.relu(lin(hv, wv1, bv1))
    x_v = jax.nn.softplus(lin(hv, wv2, bv2))

    (wfs0, bfs0), (wfs1, bfs1) = params["fs"]
    cat = jnp.concatenate([x_e, x_v], axis=1)
    x_iv = jax.nn.sigmoid(lin(lin(cat, wfs0, bfs0), wfs1, bfs1))
    return x_e, x_v, x_iv


# ---------------------------------------------------------------------------- main
if __name__ == "__main__":
    key = jax.random.PRNGKey(0)
    kx, kp = jax.random.split(key)

    B, embedding_dim = 8, 32
    x = jax.random.normal(kx, (B, embedding_dim), jnp.float32)
    params = make_params(kp, embedding_dim=embedding_dim, est_dim=64, n_fcn_layers=2)
    r_e, r_v, r_iv = estimator_reference(x, params)

    # 1) f32 weight slab, single batch tile — tight tolerance.
    packed_f32 = pack_params(params, compute_dtype=jnp.float32)
    x_e, x_v, x_iv = estimator_forward(x, packed_f32)
    jax.block_until_ready((x_e, x_v, x_iv))
    assert x_e.shape == (B, 1) and x_v.shape == (B, 1) and x_iv.shape == (B, 1)
    assert jnp.allclose(x_e, r_e, atol=1e-4, rtol=1e-4), "x_e mismatch (f32)"
    assert jnp.allclose(x_v, r_v, atol=1e-4, rtol=1e-4), "x_v mismatch (f32)"
    assert jnp.allclose(x_iv, r_iv, atol=1e-4, rtol=1e-4), "x_iv mismatch (f32)"

    # 2) batch grid + ragged last tile (B not a tile multiple; no wrapper pad/copy).
    B2 = 40
    x2 = jax.random.normal(jax.random.PRNGKey(1), (B2, embedding_dim), jnp.float32)
    refs2 = estimator_reference(x2, params)
    outs2 = estimator_forward(x2, packed_f32, block_b=16)
    jax.block_until_ready(outs2)
    for got, ref in zip(outs2, refs2):
        assert got.shape == ref.shape
        assert jnp.allclose(got, ref, atol=1e-4, rtol=1e-4), "grid-path mismatch (f32)"

    # 3) default bf16 matmul-operand fast path (x stays f32 in HBM; cast on-chip).
    packed_bf16 = pack_params(params)                         # compute_dtype=bf16 default
    outs3 = estimator_forward(x, packed_bf16)
    jax.block_until_ready(outs3)
    for got, ref in zip(outs3, (r_e, r_v, r_iv)):
        assert jnp.allclose(got, ref, atol=5e-2, rtol=5e-2), "bf16-path mismatch"

    # 4) bf16 + multi-step ragged grid.
    outs4 = estimator_forward(x2, packed_bf16, block_b=16)
    jax.block_until_ready(outs4)
    for got, ref in zip(outs4, refs2):
        assert jnp.allclose(got, ref, atol=5e-2, rtol=5e-2), "bf16 grid-path mismatch"

    print("KERNEL_OK")
</pallas_src>

<mosaic_0001>
module attributes {stable_mosaic.version = 11 : i64} {
  func.func @kernel(%arg0: i32, %arg1: memref<8x32xf32, #tpu.memory_space<vmem>>, %arg2: memref<544x128xf32, #tpu.memory_space<vmem>>, %arg3: memref<8x128xf32, #tpu.memory_space<vmem>>, %arg4: memref<3xf32, #tpu.memory_space<smem>>, %arg5: memref<8x8xf32, #tpu.memory_space<vmem>>) attributes {dimension_semantics = [#tpu.dimension_semantics<parallel>], iteration_bounds = array<i64: 1>, scalar_prefetch = 0 : i64, scratch_operands = 0 : i64, tpu.core_type = #tpu.core_type<tc>, window_params = [{transform_indices = @transform_0, window_bounds = array<i64: 8, 32>}, {pipeline_mode = #tpu.pipeline_mode<synchronous>, transform_indices = @transform_1, window_bounds = array<i64: 544, 128>}, {pipeline_mode = #tpu.pipeline_mode<synchronous>, transform_indices = @transform_2, window_bounds = array<i64: 8, 128>}, {transform_indices = @transform_3, window_bounds = array<i64: 3>}, {transform_indices = @transform_4, window_bounds = array<i64: 8, 8>}]} {
    %c0 = arith.constant 0 : index
    %c0_0 = arith.constant 0 : index
    %0 = vector.load %arg1[%c0, %c0_0] : memref<8x32xf32, #tpu.memory_space<vmem>>, vector<8x32xf32>
    %c0_1 = arith.constant 0 : index
    %c0_2 = arith.constant 0 : index
    %1 = vector.load %arg2[%c0_1, %c0_2] : memref<544x128xf32, #tpu.memory_space<vmem>>, vector<32x128xf32>
    %cst = arith.constant dense<0.000000e+00> : vector<8x128xf32>
    %2 = tpu.matmul %0, %1, %cst {dimension_numbers = #tpu.dot_dimension_numbers<[1], [0], [0], [1], [0, 0, 1, 1], [], []>} : vector<8x32xf32>, vector<32x128xf32>, vector<8x128xf32> -> vector<8x128xf32>
    %c0_3 = arith.constant 0 : index
    %c0_4 = arith.constant 0 : index
    %3 = vector.load %arg3[%c0_3, %c0_4] : memref<8x128xf32, #tpu.memory_space<vmem>>, vector<1x128xf32>
    %4 = vector.broadcast %3 : vector<1x128xf32> to vector<8x128xf32>
    %5 = arith.addf %2, %4 : vector<8x128xf32>
    %cst_5 = arith.constant 0.000000e+00 : f32
    %6 = vector.broadcast %cst_5 : f32 to vector<8x128xf32>
    %7 = arith.maximumf %5, %6 : vector<8x128xf32>
    %c32 = arith.constant 32 : index
    %c0_6 = arith.constant 0 : index
    %8 = vector.load %arg2[%c32, %c0_6] : memref<544x128xf32, #tpu.memory_space<vmem>>, vector<128x128xf32>
    %cst_7 = arith.constant dense<0.000000e+00> : vector<8x128xf32>
    %9 = tpu.matmul %7, %8, %cst_7 {dimension_numbers = #tpu.dot_dimension_numbers<[1], [0], [0], [1], [0, 0, 1, 1], [], []>} : vector<8x128xf32>, vector<128x128xf32>, vector<8x128xf32> -> vector<8x128xf32>
    %c1 = arith.constant 1 : index
    %c0_8 = arith.constant 0 : index
    %10 = vector.load %arg3[%c1, %c0_8] : memref<8x128xf32, #tpu.memory_space<vmem>>, vector<1x128xf32>
    %11 = vector.broadcast %10 : vector<1x128xf32> to vector<8x128xf32>
    %12 = arith.addf %9, %11 : vector<8x128xf32>
    %cst_9 = arith.constant 0.000000e+00 : f32
    %13 = vector.broadcast %cst_9 : f32 to vector<8x128xf32>
    %14 = arith.maximumf %12, %13 : vector<8x128xf32>
    %c160 = arith.constant 160 : index
    %c0_10 = arith.constant 0 : index
    %15 = vector.load %arg2[%c160, %c0_10] : memref<544x128xf32, #tpu.memory_space<vmem>>, vector<128x128xf32>
    %cst_11 = arith.constant dense<0.000000e+00> : vector<8x128xf32>
    %16 = tpu.matmul %14, %15, %cst_11 {dimension_numbers = #tpu.dot_dimension_numbers<[1], [0], [0], [1], [0, 0, 1, 1], [], []>} : vector<8x128xf32>, vector<128x128xf32>, vector<8x128xf32> -> vector<8x128xf32>
    %c2 = arith.constant 2 : index
    %c0_12 = arith.constant 0 : index
    %17 = vector.load %arg3[%c2, %c0_12] : memref<8x128xf32, #tpu.memory_space<vmem>>, vector<1x128xf32>
    %18 = vector.broadcast %17 : vector<1x128xf32> to vector<8x128xf32>
    %19 = arith.addf %16, %18 : vector<8x128xf32>
    %cst_13 = arith.constant 0.000000e+00 : f32
    %20 = vector.broadcast %cst_13 : f32 to vector<8x128xf32>
    %21 = arith.maximumf %19, %20 : vector<8x128xf32>
    %c288 = arith.constant 288 : index
    %c0_14 = arith.constant 0 : index
    %22 = vector.load %arg2[%c288, %c0_14] : memref<544x128xf32, #tpu.memory_space<vmem>>, vector<128x128xf32>
    %cst_15 = arith.constant dense<0.000000e+00> : vector<8x128xf32>
    %23 = tpu.matmul %21, %22, %cst_15 {dimension_numbers = #tpu.dot_dimension_numbers<[1], [0], [0], [1], [0, 0, 1, 1], [], []>} : vector<8x128xf32>, vector<128x128xf32>, vector<8x128xf32> -> vector<8x128xf32>
    %c3 = arith.constant 3 : index
    %c0_16 = arith.constant 0 : index
    %24 = vector.load %arg3[%c3, %c0_16] : memref<8x128xf32, #tpu.memory_space<vmem>>, vector<1x128xf32>
    %25 = vector.broadcast %24 : vector<1x128xf32> to vector<8x128xf32>
    %26 = arith.addf %23, %25 : vector<8x128xf32>
    %cst_17 = arith.constant 0.000000e+00 : f32
    %27 = vector.broadcast %cst_17 : f32 to vector<8x128xf32>
    %28 = arith.maximumf %26, %27 : vector<8x128xf32>
    %c416 = arith.constant 416 : index
    %c0_18 = arith.constant 0 : index
    %29 = vector.load %arg2[%c416, %c0_18] : memref<544x128xf32, #tpu.memory_space<vmem>>, vector<128x128xf32>
    %cst_19 = arith.constant dense<0.000000e+00> : vector<8x128xf32>
    %30 = tpu.matmul %28, %29, %cst_19 {dimension_numbers = #tpu.dot_dimension_numbers<[1], [0], [0], [1], [0, 0, 1, 1], [], []>} : vector<8x128xf32>, vector<128x128xf32>, vector<8x128xf32> -> vector<8x128xf32>
    %c4 = arith.constant 4 : index
    %c0_20 = arith.constant 0 : index
    %31 = vector.load %arg3[%c4, %c0_20] : memref<8x128xf32, #tpu.memory_space<vmem>>, vector<1x128xf32>
    %32 = vector.broadcast %31 : vector<1x128xf32> to vector<8x128xf32>
    %33 = arith.addf %30, %32 : vector<8x128xf32>
    %34 = vector.extract_strided_slice %33 {offsets = [0, 0], sizes = [8, 1], strides = [1, 1]} : vector<8x128xf32> to vector<8x1xf32>
    %35 = vector.extract_strided_slice %33 {offsets = [0, 1], sizes = [8, 1], strides = [1, 1]} : vector<8x128xf32> to vector<8x1xf32>
    %36 = arith.negf %34 : vector<8x1xf32>
    %37 = math.exp %36 : vector<8x1xf32>
    %cst_21 = arith.constant 1.000000e+00 : f32
    %38 = vector.broadcast %cst_21 : f32 to vector<8x1xf32>
    %39 = arith.addf %38, %37 : vector<8x1xf32>
    %40 = arith.divf %38, %39 : vector<8x1xf32>
    %cst_22 = arith.constant 0.000000e+00 : f32
    %41 = vector.broadcast %cst_22 : f32 to vector<8x1xf32>
    %42 = arith.maximumf %35, %41 : vector<8x1xf32>
    %43 = math.absf %35 : vector<8x1xf32>
    %cst_23 = arith.constant 0.000000e+00 : f32
    %44 = vector.broadcast %cst_23 : f32 to vector<8x1xf32>
    %45 = arith.subf %44, %43 : vector<8x1xf32>
    %46 = math.exp %45 : vector<8x1xf32>
    %47 = math.log1p %46 : vector<8x1xf32>
    %48 = arith.addf %42, %47 : vector<8x1xf32>
    %c0_24 = arith.constant 0 : index
    %49 = memref.load %arg4[%c0_24] : memref<3xf32, #tpu.memory_space<smem>>
    %c1_25 = arith.constant 1 : index
    %50 = memref.load %arg4[%c1_25] : memref<3xf32, #tpu.memory_space<smem>>
    %c2_26 = arith.constant 2 : index
    %51 = memref.load %arg4[%c2_26] : memref<3xf32, #tpu.memory_space<smem>>
    %52 = vector.broadcast %49 : f32 to vector<8x1xf32>
    %53 = arith.mulf %52, %40 : vector<8x1xf32>
    %54 = vector.broadcast %50 : f32 to vector<8x1xf32>
    %55 = arith.mulf %54, %48 : vector<8x1xf32>
    %56 = arith.addf %53, %55 : vector<8x1xf32>
    %57 = vector.broadcast %51 : f32 to vector<8x1xf32>
    %58 = arith.addf %56, %57 : vector<8x1xf32>
    %59 = arith.negf %58 : vector<8x1xf32>
    %60 = math.exp %59 : vector<8x1xf32>
    %cst_27 = arith.constant 1.000000e+00 : f32
    %61 = vector.broadcast %cst_27 : f32 to vector<8x1xf32>
    %62 = arith.addf %61, %60 : vector<8x1xf32>
    %63 = arith.divf %61, %62 : vector<8x1xf32>
    %64 = tpu.iota {dimensions = array<i32: 1>} : vector<8x8xi32>
    %c0_i32 = arith.constant 0 : i32
    %65 = vector.broadcast %c0_i32 : i32 to vector<8x8xi32>
    %66 = arith.cmpi eq, %64, %65 : vector<8x8xi32>
    %c1_i32 = arith.constant 1 : i32
    %67 = vector.broadcast %c1_i32 : i32 to vector<8x8xi32>
    %68 = arith.cmpi eq, %64, %67 : vector<8x8xi32>
    %c2_i32 = arith.constant 2 : i32
    %69 = vector.broadcast %c2_i32 : i32 to vector<8x8xi32>
    %70 = arith.cmpi eq, %64, %69 : vector<8x8xi32>
    %cst_28 = arith.constant 0.000000e+00 : f32
    %71 = vector.shape_cast %63 : vector<8x1xf32> to vector<8x1xf32>
    %72 = vector.broadcast %71 : vector<8x1xf32> to vector<8x8xf32>
    %73 = vector.broadcast %cst_28 : f32 to vector<8x8xf32>
    %74 = arith.select %70, %72, %73 : vector<8x8xi1>, vector<8x8xf32>
    %75 = vector.shape_cast %48 : vector<8x1xf32> to vector<8x1xf32>
    %76 = vector.broadcast %75 : vector<8x1xf32> to vector<8x8xf32>
    %77 = arith.select %68, %76, %74 : vector<8x8xi1>, vector<8x8xf32>
    %78 = vector.shape_cast %40 : vector<8x1xf32> to vector<8x1xf32>
    %79 = vector.broadcast %78 : vector<8x1xf32> to vector<8x8xf32>
    %80 = arith.select %66, %79, %77 : vector<8x8xi1>, vector<8x8xf32>
    %c0_29 = arith.constant 0 : index
    %c0_30 = arith.constant 0 : index
    %81 = vector.load %arg5[%c0_29, %c0_30] : memref<8x8xf32, #tpu.memory_space<vmem>>, vector<8x8xf32>
    tpu.vector_store %arg5[%c0_29, %c0_30], %80 {strides = array<i32>} : memref<8x8xf32, #tpu.memory_space<vmem>>, vector<8x8xf32>,
    return
  }
  func.func @transform_0(%arg0: i32) -> (i32, i32) {
    %c0_i32 = arith.constant 0 : i32
    %c0_i32_0 = arith.constant 0 : i32
    return %arg0, %c0_i32 : i32, i32
  }
  func.func @transform_1(%arg0: i32) -> (i32, i32) {
    %c0_i32 = arith.constant 0 : i32
    %c0_i32_0 = arith.constant 0 : i32
    %c0_i32_1 = arith.constant 0 : i32
    return %c0_i32, %c0_i32_0 : i32, i32
  }
  func.func @transform_2(%arg0: i32) -> (i32, i32) {
    %c0_i32 = arith.constant 0 : i32
    %c0_i32_0 = arith.constant 0 : i32
    %c0_i32_1 = arith.constant 0 : i32
    return %c0_i32, %c0_i32_0 : i32, i32
  }
  func.func @transform_3(%arg0: i32) -> i32 {
    %c0_i32 = arith.constant 0 : i32
    %c0_i32_0 = arith.constant 0 : i32
    return %c0_i32 : i32
  }
  func.func @transform_4(%arg0: i32) -> (i32, i32) {
    %c0_i32 = arith.constant 0 : i32
    %c0_i32_0 = arith.constant 0 : i32
    return %arg0, %c0_i32 : i32, i32
  }
}

</mosaic_0001>

<llo_original>
// kernel: tpu_custom_call.1
$region0: #{tpu_custom_call.1}
  #allocation0 [shape = 'u32[]', space=smem, size = 0x4, offset = 0x4, fixed_abs, tag = 'smem constant byte address 0x4 - core index']
  #allocation1 [shape = 'u32[144,128]{1,0:T(1,128)}', space=vmem, size = 0x12000, scoped, tag = 'internal scratch']
  %s0 = inlined_call_operand.hbm [shape: f32[8,32], index: 0, kind: input, shape index: {}]
  %s1 = inlined_call_operand.hbm [shape: f32[544,128], index: 1, kind: input, shape index: {}]
  %s2 = inlined_call_operand.hbm [shape: f32[8,128], index: 2, kind: input, shape index: {}]
  %s3 = inlined_call_operand.vmem [shape: f32[3], index: 3, kind: input, shape index: {}]
  %s4 = inlined_call_operand.hbm [shape: f32[8,8], index: 4, kind: output, shape index: {}]
  %s5 = sld [smem:[#allocation0]]
  $region42: #{tpu_custom_call.1} parent=0
    _
  %s7 = ssub.s32 1, %s5
  %s8 = scalar_select 0, %s7, %s5
  $region1: #{tpu_custom_call.1} parent=0
    #allocation2 [shape = 'u8[4096]{0}', space=vmem, size = 0x1000, scoped, tag = 'input window, operand 0, single buffered']
    #allocation3 [shape = 's32[1]{0}', space=sflag, size = 0x4, scoped, tag = 'scoped memory for tpu_custom_call.1']
    #allocation4 [shape = 's32[1]{0}', space=sflag, size = 0x4, scoped, tag = 'scoped memory for tpu_custom_call.1']
    #allocation5 [shape = 's32[1]{0}', space=sflag, size = 0x4, scoped, tag = 'scoped memory for tpu_custom_call.1']
    #allocation6 [shape = 'u8[278528]{0}', space=vmem, size = 0x44000, scoped, tag = 'input window, operand 1, single buffered']
    #allocation7 [shape = 's32[1]{0}', space=sflag, size = 0x4, scoped, tag = 'scoped memory for tpu_custom_call.1']
    #allocation8 [shape = 'u8[4096]{0}', space=vmem, size = 0x1000, scoped, tag = 'input window, operand 2, single buffered']
    #allocation9 [shape = 'u8[512]{0}', space=smem, size = 0x200, scoped, tag = 'input window, operand 3, single buffered']
    #allocation10 [shape = 'u8[4096]{0}', space=vmem, size = 0x1000, scoped, tag = 'output window, operand 0, single buffered']
    %9 = vsyncpa [#allocation3], 0
    %10 = vsyncpa [#allocation7], 0
    %11 = vsyncpa [#allocation5], 0
    %12 = vsyncpa [#allocation4], 0
    // Predicated region
    $region2: #{tpu_custom_call.1} parent=1 // pred_check
      _
    $region3: #{tpu_custom_call.1} parent=1 // pred_check_branch
      %14 = sbr.rel (0) target = $region5
    $region4: #{tpu_custom_call.1} parent=1 // pred_region
      %s16 = ssub.s32 128, 128
      %17 = vsyncadd [#allocation3], %s16
      %s19 = sshll.u32 [#allocation2], 4
      %s20 = int_to_ptr.vmem [resolvable:$true] %s19
      %22 = dma.hbm_to_vmem [thread:$0]  %s0, 128, %s20, [#allocation3]
    $region5: #{tpu_custom_call.1} parent=1 // pred_fallthru
      _
    // Predicated region
    $region6: #{tpu_custom_call.1} parent=1 // pred_check
      _
    $region7: #{tpu_custom_call.1} parent=1 // pred_check_branch
      %24 = sbr.rel (0) target = $region9
    $region8: #{tpu_custom_call.1} parent=1 // pred_region
      %s26 = ssub.s32 8704, 8704
      %27 = vsyncadd [#allocation7], %s26
      %s28 = sshll.u32 [#allocation6], 4
      %s29 = int_to_ptr.vmem [resolvable:$true] %s28
      %34 = dma.hbm_to_vmem [thread:$0]  %s1, 8704, %s29, [#allocation7], 128, 128, 8
    $region9: #{tpu_custom_call.1} parent=1 // pred_fallthru
      _
    // Predicated region
    $region10: #{tpu_custom_call.1} parent=1 // pred_check
      _
    $region11: #{tpu_custom_call.1} parent=1 // pred_check_branch
      %36 = sbr.rel (0) target = $region13
    $region12: #{tpu_custom_call.1} parent=1 // pred_region
      %s38 = ssub.s32 128, 128
      %39 = vsyncadd [#allocation7], %s38
      %s41 = sshll.u32 [#allocation8], 4
      %s42 = int_to_ptr.vmem [resolvable:$true] %s41
      %44 = dma.hbm_to_vmem [thread:$0]  %s2, 128, %s42, [#allocation7]
    $region13: #{tpu_custom_call.1} parent=1 // pred_fallthru
      _
    // Predicated region
    $region14: #{tpu_custom_call.1} parent=1 // pred_check
      _
    $region15: #{tpu_custom_call.1} parent=1 // pred_check_branch
      %46 = sbr.rel (0) target = $region17
    $region16: #{tpu_custom_call.1} parent=1 // pred_region
      %s48 = ssub.s32 16, 16
      %49 = vsyncadd [#allocation5], %s48
      %s51 = sshll.u32 %s3, 4
      %s52 = int_to_ptr.vmem [resolvable:$true] %s51
      %54 = dma.vmem_to_smem %s52, 16, [#allocation9], [#allocation5]
    $region17: #{tpu_custom_call.1} parent=1 // pred_fallthru
      _
    // Predicated region
    $region18: #{tpu_custom_call.1} parent=1 // pred_check
      _
    $region19: #{tpu_custom_call.1} parent=1 // pred_check_branch
      %56 = sbr.rel (0) target = $region21
    $region20: #{tpu_custom_call.1} parent=1 // pred_region
      %57 = dma.done [#allocation3], 128
    $region21: #{tpu_custom_call.1} parent=1 // pred_fallthru
      _
    // Predicated region
    $region22: #{tpu_custom_call.1} parent=1 // pred_check
      _
    $region23: #{tpu_custom_call.1} parent=1 // pred_check_branch
      %59 = sbr.rel (0) target = $region25
    $region24: #{tpu_custom_call.1} parent=1 // pred_region
      %60 = dma.done [#allocation7], 8704
    $region25: #{tpu_custom_call.1} parent=1 // pred_fallthru
      _
    // Predicated region
    $region26: #{tpu_custom_call.1} parent=1 // pred_check
      _
    $region27: #{tpu_custom_call.1} parent=1 // pred_check_branch
      %62 = sbr.rel (0) target = $region29
    $region28: #{tpu_custom_call.1} parent=1 // pred_region
      %63 = dma.done [#allocation7], 128
    $region29: #{tpu_custom_call.1} parent=1 // pred_fallthru
      _
    // Predicated region
    $region30: #{tpu_custom_call.1} parent=1 // pred_check
      _
    $region31: #{tpu_custom_call.1} parent=1 // pred_check_branch
      %65 = sbr.rel (0) target = $region33
    $region32: #{tpu_custom_call.1} parent=1 // pred_region
      %66 = dma.done [#allocation5], 16
    $region33: #{tpu_custom_call.1} parent=1 // pred_fallthru
      _
    %67 = sfence
    %v68 = vld [vmem:[#allocation2] sm:$0xff]
    %v69 = vld [vmem:[#allocation6] sm:$0xff]
    %v70 = vld [vmem:[#allocation6 + $0x8] sm:$0xff]
    %v71 = vld [vmem:[#allocation6 + $0x10] sm:$0xff]
    %v72 = vld [vmem:[#allocation6 + $0x18] sm:$0xff]
    %v73 = vld [vmem:[#allocation8] sm:$0x1]
    %v74 = vlaneseq
    %v75 = vshrl.u32 %v74, 7
    %v76 = vsub.s32 0, %v75
    %v77 = vrot.slane %v73, %v76
    %vm78 = vcmask 261120
    %v80 = vsel %vm78, %v68, 0
    %82 = vmatprep.subr.mxu0 0.0
    %83 = vmatpush1.msra.mxu0 0.0
    %84 = vmatprep.subr.mxu0 0.0
    %85 = vmatpush1.msra.mxu0 0.0
    %86 = vmatprep.subr.mxu0 0.0
    %87 = vmatpush1.msra.mxu0 0.0
    %88 = vmatprep.subr.mxu0 0.0
    %89 = vmatpush1.msra.mxu0 0.0
    %90 = vmatprep.subr.mxu0 0.0
    %91 = vmatpush1.msra.mxu0 0.0
    %92 = vmatprep.subr.mxu0 0.0
    %93 = vmatpush1.msra.mxu0 0.0
    %94 = vmatprep.subr.mxu0 0.0
    %95 = vmatpush1.msra.mxu0 0.0
    %96 = vmatprep.subr.mxu0 0.0
    %97 = vmatpush1.msra.mxu0 0.0
    %98 = vmatprep.subr.mxu0 0.0
    %99 = vmatpush1.msra.mxu0 0.0
    %100 = vmatprep.subr.mxu0 0.0
    %101 = vmatpush1.msra.mxu0 0.0
    %102 = vmatprep.subr.mxu0 0.0
    %103 = vmatpush1.msra.mxu0 0.0
    %104 = vmatprep.subr.mxu0 0.0
    %105 = vmatpush1.msra.mxu0 0.0
    %106 = vmatprep.subr.mxu0 0.0
    %107 = vmatpush1.msra.mxu0 %v72
    %108 = vmatprep.subr.mxu0 0.0
    %109 = vmatpush1.msra.mxu0 %v71
    %110 = vmatprep.subr.mxu0 0.0
    %111 = vmatpush1.msra.mxu0 %v70
    %112 = vmatprep.subr.mxu0 0.0
    %113 = vmatpush1.msra.mxu0 %v69
    %114 = vmatprep.subr.mxu0 0.0
    %115 = vmatpush2.msra.mxu0 0.0
    %116 = vmatprep.subr.mxu0 0.0
    %117 = vmatpush2.msra.mxu0 0.0
    %118 = vmatprep.subr.mxu0 0.0
    %119 = vmatpush2.msra.mxu0 0.0
    %120 = vmatprep.subr.mxu0 0.0
    %121 = vmatpush2.msra.mxu0 0.0
    %122 = vmatprep.subr.mxu0 0.0
    %123 = vmatpush2.msra.mxu0 0.0
    %124 = vmatprep.subr.mxu0 0.0
    %125 = vmatpush2.msra.mxu0 0.0
    %126 = vmatprep.subr.mxu0 0.0
    %127 = vmatpush2.msra.mxu0 0.0
    %128 = vmatprep.subr.mxu0 0.0
    %129 = vmatpush2.msra.mxu0 0.0
    %130 = vmatprep.subr.mxu0 0.0
    %131 = vmatpush2.msra.mxu0 0.0
    %132 = vmatprep.subr.mxu0 0.0
    %133 = vmatpush2.msra.mxu0 0.0
    %134 = vmatprep.subr.mxu0 0.0
    %135 = vmatpush2.msra.mxu0 0.0
    %136 = vmatprep.subr.mxu0 0.0
    %137 = vmatpush2.msra.mxu0 0.0
    %138 = vmatprep.subr.mxu0 0.0
    %139 = vmatpush2.msra.mxu0 0.0
    %140 = vmatprep.subr.mxu0 0.0
    %141 = vmatpush2.msra.mxu0 0.0
    %142 = vmatprep.subr.mxu0 0.0
    %143 = vmatpush2.msra.mxu0 0.0
    %144 = vmatprep.subr.mxu0 0.0
    %145 = vmatpush2.msra.mxu0 0.0
    %146 = vmatprep.mubr.f32.mxu0 0.0
    %147 = vmatmul.mubr.f32.gmra.mxu0 %v80
    %v148 = vpop.f32.mrf.mxu0
    %v149 = vadd.f32 %v77, %v148
    %v150 = vpop.f32.mrf.mxu0
    %151 = vdwg.mxu0
    %v152 = vmax.f32 %v149, 0.0
    %v153 = vld [vmem:[#allocation6 + $0x20] sm:$0xff]
    %v154 = vld [vmem:[#allocation6 + $0x28] sm:$0xff]
    %v155 = vld [vmem:[#allocation6 + $0x30] sm:$0xff]
    %v156 = vld [vmem:[#allocation6 + $0x38] sm:$0xff]
    %v157 = vld [vmem:[#allocation6 + $0x40] sm:$0xff]
    %v158 = vld [vmem:[#allocation6 + $0x48] sm:$0xff]
    %v159 = vld [vmem:[#allocation6 + $0x50] sm:$0xff]
    %v160 = vld [vmem:[#allocation6 + $0x58] sm:$0xff]
    %v161 = vld [vmem:[#allocation6 + $0x60] sm:$0xff]
    %v162 = vld [vmem:[#allocation6 + $0x68] sm:$0xff]
    %v163 = vld [vmem:[#allocation6 + $0x70] sm:$0xff]
    %v164 = vld [vmem:[#allocation6 + $0x78] sm:$0xff]
    %v165 = vld [vmem:[#allocation6 + $0x80] sm:$0xff]
    %v166 = vld [vmem:[#allocation6 + $0x88] sm:$0xff]
    %v167 = vld [vmem:[#allocation6 + $0x90] sm:$0xff]
    %v168 = vld [vmem:[#allocation6 + $0x98] sm:$0xff]
    %v169 = vld [vmem:[#allocation8 + $0x1] sm:$0x1]
    %v170 = vlaneseq
    %v171 = vshrl.u32 %v170, 7
    %v172 = vsub.s32 0, %v171
    %v173 = vrot.slane %v169, %v172
    %174 = vmatprep.subr.mxu0 0.0
    %175 = vmatpush1.msra.mxu0 %v168
    %176 = vmatprep.subr.mxu0 0.0
    %177 = vmatpush1.msra.mxu0 %v167
    %178 = vmatprep.subr.mxu0 0.0
    %179 = vmatpush1.msra.mxu0 %v166
    %180 = vmatprep.subr.mxu0 0.0
    %181 = vmatpush1.msra.mxu0 %v165
    %182 = vmatprep.subr.mxu0 0.0
    %183 = vmatpush1.msra.mxu0 %v164
    %184 = vmatprep.subr.mxu0 0.0
    %185 = vmatpush1.msra.mxu0 %v163
    %186 = vmatprep.subr.mxu0 0.0
    %187 = vmatpush1.msra.mxu0 %v162
    %188 = vmatprep.subr.mxu0 0.0
    %189 = vmatpush1.msra.mxu0 %v161
    %190 = vmatprep.subr.mxu0 0.0
    %191 = vmatpush1.msra.mxu0 %v160
    %192 = vmatprep.subr.mxu0 0.0
    %193 = vmatpush1.msra.mxu0 %v159
    %194 = vmatprep.subr.mxu0 0.0
    %195 = vmatpush1.msra.mxu0 %v158
    %196 = vmatprep.subr.mxu0 0.0
    %197 = vmatpush1.msra.mxu0 %v157
    %198 = vmatprep.subr.mxu0 0.0
    %199 = vmatpush1.msra.mxu0 %v156
    %200 = vmatprep.subr.mxu0 0.0
    %201 = vmatpush1.msra.mxu0 %v155
    %202 = vmatprep.subr.mxu0 0.0
    %203 = vmatpush1.msra.mxu0 %v154
    %204 = vmatprep.subr.mxu0 0.0
    %205 = vmatpush1.msra.mxu0 %v153
    %206 = vmatprep.subr.mxu0 0.0
    %207 = vmatpush2.msra.mxu0 0.0
    %208 = vmatprep.subr.mxu0 0.0
    %209 = vmatpush2.msra.mxu0 0.0
    %210 = vmatprep.subr.mxu0 0.0
    %211 = vmatpush2.msra.mxu0 0.0
    %212 = vmatprep.subr.mxu0 0.0
    %213 = vmatpush2.msra.mxu0 0.0
    %214 = vmatprep.subr.mxu0 0.0
    %215 = vmatpush2.msra.mxu0 0.0
    %216 = vmatprep.subr.mxu0 0.0
    %217 = vmatpush2.msra.mxu0 0.0
    %218 = vmatprep.subr.mxu0 0.0
    %219 = vmatpush2.msra.mxu0 0.0
    %220 = vmatprep.subr.mxu0 0.0
    %221 = vmatpush2.msra.mxu0 0.0
    %222 = vmatprep.subr.mxu0 0.0
    %223 = vmatpush2.msra.mxu0 0.0
    %224 = vmatprep.subr.mxu0 0.0
    %225 = vmatpush2.msra.mxu0 0.0
    %226 = vmatprep.subr.mxu0 0.0
    %227 = vmatpush2.msra.mxu0 0.0
    %228 = vmatprep.subr.mxu0 0.0
    %229 = vmatpush2.msra.mxu0 0.0
    %230 = vmatprep.subr.mxu0 0.0
    %231 = vmatpush2.msra.mxu0 0.0
    %232 = vmatprep.subr.mxu0 0.0
    %233 = vmatpush2.msra.mxu0 0.0
    %234 = vmatprep.subr.mxu0 0.0
    %235 = vmatpush2.msra.mxu0 0.0
    %236 = vmatprep.subr.mxu0 0.0
    %237 = vmatpush2.msra.mxu0 0.0
    %238 = vmatprep.mubr.f32.mxu0 0.0
    %239 = vmatmul.mubr.f32.gmra.mxu0 %v152
    %v240 = vpop.f32.mrf.mxu0
    %v241 = vadd.f32 %v173, %v240
    %v242 = vpop.f32.mrf.mxu0
    %243 = vdwg.mxu0
    %v244 = vmax.f32 %v241, 0.0
    %v245 = vld [vmem:[#allocation6 + $0xa0] sm:$0xff]
    %v246 = vld [vmem:[#allocation6 + $0xa8] sm:$0xff]
    %v247 = vld [vmem:[#allocation6 + $0xb0] sm:$0xff]
    %v248 = vld [vmem:[#allocation6 + $0xb8] sm:$0xff]
    %v249 = vld [vmem:[#allocation6 + $0xc0] sm:$0xff]
    %v250 = vld [vmem:[#allocation6 + $0xc8] sm:$0xff]
    %v251 = vld [vmem:[#allocation6 + $0xd0] sm:$0xff]
    %v252 = vld [vmem:[#allocation6 + $0xd8] sm:$0xff]
    %v253 = vld [vmem:[#allocation6 + $0xe0] sm:$0xff]
    %v254 = vld [vmem:[#allocation6 + $0xe8] sm:$0xff]
    %v255 = vld [vmem:[#allocation6 + $0xf0] sm:$0xff]
    %v256 = vld [vmem:[#allocation6 + $0xf8] sm:$0xff]
    %v257 = vld [vmem:[#allocation6 + $0x100] sm:$0xff]
    %v258 = vld [vmem:[#allocation6 + $0x108] sm:$0xff]
    %v259 = vld [vmem:[#allocation6 + $0x110] sm:$0xff]
    %v260 = vld [vmem:[#allocation6 + $0x118] sm:$0xff]
    %v261 = vld [vmem:[#allocation8 + $0x2] sm:$0x1]
    %v262 = vlaneseq
    %v263 = vshrl.u32 %v262, 7
    %v264 = vsub.s32 0, %v263
    %v265 = vrot.slane %v261, %v264
    %266 = vmatprep.subr.mxu0 0.0
    %267 = vmatpush1.msra.mxu0 %v260
    %268 = vmatprep.subr.mxu0 0.0
    %269 = vmatpush1.msra.mxu0 %v259
    %270 = vmatprep.subr.mxu0 0.0
    %271 = vmatpush1.msra.mxu0 %v258
    %272 = vmatprep.subr.mxu0 0.0
    %273 = vmatpush1.msra.mxu0 %v257
    %274 = vmatprep.subr.mxu0 0.0
    %275 = vmatpush1.msra.mxu0 %v256
    %276 = vmatprep.subr.mxu0 0.0
    %277 = vmatpush1.msra.mxu0 %v255
    %278 = vmatprep.subr.mxu0 0.0
    %279 = vmatpush1.msra.mxu0 %v254
    %280 = vmatprep.subr.mxu0 0.0
    %281 = vmatpush1.msra.mxu0 %v253
    %282 = vmatprep.subr.mxu0 0.0
    %283 = vmatpush1.msra.mxu0 %v252
    %284 = vmatprep.subr.mxu0 0.0
    %285 = vmatpush1.msra.mxu0 %v251
    %286 = vmatprep.subr.mxu0 0.0
    %287 = vmatpush1.msra.mxu0 %v250
    %288 = vmatprep.subr.mxu0 0.0
    %289 = vmatpush1.msra.mxu0 %v249
    %290 = vmatprep.subr.mxu0 0.0
    %291 = vmatpush1.msra.mxu0 %v248
    %292 = vmatprep.subr.mxu0 0.0
    %293 = vmatpush1.msra.mxu0 %v247
    %294 = vmatprep.subr.mxu0 0.0
    %295 = vmatpush1.msra.mxu0 %v246
    %296 = vmatprep.subr.mxu0 0.0
    %297 = vmatpush1.msra.mxu0 %v245
    %298 = vmatprep.subr.mxu0 0.0
    %299 = vmatpush2.msra.mxu0 0.0
    %300 = vmatprep.subr.mxu0 0.0
    %301 = vmatpush2.msra.mxu0 0.0
    %302 = vmatprep.subr.mxu0 0.0
    %303 = vmatpush2.msra.mxu0 0.0
    %304 = vmatprep.subr.mxu0 0.0
    %305 = vmatpush2.msra.mxu0 0.0
    %306 = vmatprep.subr.mxu0 0.0
    %307 = vmatpush2.msra.mxu0 0.0
    %308 = vmatprep.subr.mxu0 0.0
    %309 = vmatpush2.msra.mxu0 0.0
    %310 = vmatprep.subr.mxu0 0.0
    %311 = vmatpush2.msra.mxu0 0.0
    %312 = vmatprep.subr.mxu0 0.0
    %313 = vmatpush2.msra.mxu0 0.0
    %314 = vmatprep.subr.mxu0 0.0
    %315 = vmatpush2.msra.mxu0 0.0
    %316 = vmatprep.subr.mxu0 0.0
    %317 = vmatpush2.msra.mxu0 0.0
    %318 = vmatprep.subr.mxu0 0.0
    %319 = vmatpush2.msra.mxu0 0.0
    %320 = vmatprep.subr.mxu0 0.0
    %321 = vmatpush2.msra.mxu0 0.0
    %322 = vmatprep.subr.mxu0 0.0
    %323 = vmatpush2.msra.mxu0 0.0
    %324 = vmatprep.subr.mxu0 0.0
    %325 = vmatpush2.msra.mxu0 0.0
    %326 = vmatprep.subr.mxu0 0.0
    %327 = vmatpush2.msra.mxu0 0.0
    %328 = vmatprep.subr.mxu0 0.0
    %329 = vmatpush2.msra.mxu0 0.0
    %330 = vmatprep.mubr.f32.mxu0 0.0
    %331 = vmatmul.mubr.f32.gmra.mxu0 %v244
    %v332 = vpop.f32.mrf.mxu0
    %v333 = vadd.f32 %v265, %v332
    %v334 = vpop.f32.mrf.mxu0
    %335 = vdwg.mxu0
    %v336 = vmax.f32 %v333, 0.0
    %v337 = vld [vmem:[#allocation6 + $0x120] sm:$0xff]
    %v338 = vld [vmem:[#allocation6 + $0x128] sm:$0xff]
    %v339 = vld [vmem:[#allocation6 + $0x130] sm:$0xff]
    %v340 = vld [vmem:[#allocation6 + $0x138] sm:$0xff]
    %v341 = vld [vmem:[#allocation6 + $0x140] sm:$0xff]
    %v342 = vld [vmem:[#allocation6 + $0x148] sm:$0xff]
    %v343 = vld [vmem:[#allocation6 + $0x150] sm:$0xff]
    %v344 = vld [vmem:[#allocation6 + $0x158] sm:$0xff]
    %v345 = vld [vmem:[#allocation6 + $0x160] sm:$0xff]
    %v346 = vld [vmem:[#allocation6 + $0x168] sm:$0xff]
    %v347 = vld [vmem:[#allocation6 + $0x170] sm:$0xff]
    %v348 = vld [vmem:[#allocation6 + $0x178] sm:$0xff]
    %v349 = vld [vmem:[#allocation6 + $0x180] sm:$0xff]
    %v350 = vld [vmem:[#allocation6 + $0x188] sm:$0xff]
    %v351 = vld [vmem:[#allocation6 + $0x190] sm:$0xff]
    %v352 = vld [vmem:[#allocation6 + $0x198] sm:$0xff]
    %v353 = vld [vmem:[#allocation8 + $0x3] sm:$0x1]
    %v354 = vlaneseq
    %v355 = vshrl.u32 %v354, 7
    %v356 = vsub.s32 0, %v355
    %v357 = vrot.slane %v353, %v356
    %358 = vmatprep.subr.mxu0 0.0
    %359 = vmatpush1.msra.mxu0 %v352
    %360 = vmatprep.subr.mxu0 0.0
    %361 = vmatpush1.msra.mxu0 %v351
    %362 = vmatprep.subr.mxu0 0.0
    %363 = vmatpush1.msra.mxu0 %v350
    %364 = vmatprep.subr.mxu0 0.0
    %365 = vmatpush1.msra.mxu0 %v349
    %366 = vmatprep.subr.mxu0 0.0
    %367 = vmatpush1.msra.mxu0 %v348
    %368 = vmatprep.subr.mxu0 0.0
    %369 = vmatpush1.msra.mxu0 %v347
    %370 = vmatprep.subr.mxu0 0.0
    %371 = vmatpush1.msra.mxu0 %v346
    %372 = vmatprep.subr.mxu0 0.0
    %373 = vmatpush1.msra.mxu0 %v345
    %374 = vmatprep.subr.mxu0 0.0
    %375 = vmatpush1.msra.mxu0 %v344
    %376 = vmatprep.subr.mxu0 0.0
    %377 = vmatpush1.msra.mxu0 %v343
    %378 = vmatprep.subr.mxu0 0.0
    %379 = vmatpush1.msra.mxu0 %v342
    %380 = vmatprep.subr.mxu0 0.0
    %381 = vmatpush1.msra.mxu0 %v341
    %382 = vmatprep.subr.mxu0 0.0
    %383 = vmatpush1.msra.mxu0 %v340
    %384 = vmatprep.subr.mxu0 0.0
    %385 = vmatpush1.msra.mxu0 %v339
    %386 = vmatprep.subr.mxu0 0.0
    %387 = vmatpush1.msra.mxu0 %v338
    %388 = vmatprep.subr.mxu0 0.0
    %389 = vmatpush1.msra.mxu0 %v337
    %390 = vmatprep.subr.mxu0 0.0
    %391 = vmatpush2.msra.mxu0 0.0
    %392 = vmatprep.subr.mxu0 0.0
    %393 = vmatpush2.msra.mxu0 0.0
    %394 = vmatprep.subr.mxu0 0.0
    %395 = vmatpush2.msra.mxu0 0.0
    %396 = vmatprep.subr.mxu0 0.0
    %397 = vmatpush2.msra.mxu0 0.0
    %398 = vmatprep.subr.mxu0 0.0
    %399 = vmatpush2.msra.mxu0 0.0
    %400 = vmatprep.subr.mxu0 0.0
    %401 = vmatpush2.msra.mxu0 0.0
    %402 = vmatprep.subr.mxu0 0.0
    %403 = vmatpush2.msra.mxu0 0.0
    %404 = vmatprep.subr.mxu0 0.0
    %405 = vmatpush2.msra.mxu0 0.0
    %406 = vmatprep.subr.mxu0 0.0
    %407 = vmatpush2.msra.mxu0 0.0
    %408 = vmatprep.subr.mxu0 0.0
    %409 = vmatpush2.msra.mxu0 0.0
    %410 = vmatprep.subr.mxu0 0.0
    %411 = vmatpush2.msra.mxu0 0.0
    %412 = vmatprep.subr.mxu0 0.0
    %413 = vmatpush2.msra.mxu0 0.0
    %414 = vmatprep.subr.mxu0 0.0
    %415 = vmatpush2.msra.mxu0 0.0
    %416 = vmatprep.subr.mxu0 0.0
    %417 = vmatpush2.msra.mxu0 0.0
    %418 = vmatprep.subr.mxu0 0.0
    %419 = vmatpush2.msra.mxu0 0.0
    %420 = vmatprep.subr.mxu0 0.0
    %421 = vmatpush2.msra.mxu0 0.0
    %422 = vmatprep.mubr.f32.mxu0 0.0
    %423 = vmatmul.mubr.f32.gmra.mxu0 %v336
    %v424 = vpop.f32.mrf.mxu0
    %v425 = vadd.f32 %v357, %v424
    %v426 = vpop.f32.mrf.mxu0
    %427 = vdwg.mxu0
    %v428 = vmax.f32 %v425, 0.0
    %v429 = vld [vmem:[#allocation6 + $0x1a0] sm:$0xff]
    %v430 = vld [vmem:[#allocation6 + $0x1a8] sm:$0xff]
    %v431 = vld [vmem:[#allocation6 + $0x1b0] sm:$0xff]
    %v432 = vld [vmem:[#allocation6 + $0x1b8] sm:$0xff]
    %v433 = vld [vmem:[#allocation6 + $0x1c0] sm:$0xff]
    %v434 = vld [vmem:[#allocation6 + $0x1c8] sm:$0xff]
    %v435 = vld [vmem:[#allocation6 + $0x1d0] sm:$0xff]
    %v436 = vld [vmem:[#allocation6 + $0x1d8] sm:$0xff]
    %v437 = vld [vmem:[#allocation6 + $0x1e0] sm:$0xff]
    %v438 = vld [vmem:[#allocation6 + $0x1e8] sm:$0xff]
    %v439 = vld [vmem:[#allocation6 + $0x1f0] sm:$0xff]
    %v440 = vld [vmem:[#allocation6 + $0x1f8] sm:$0xff]
    %v441 = vld [vmem:[#allocation6 + $0x200] sm:$0xff]
    %v442 = vld [vmem:[#allocation6 + $0x208] sm:$0xff]
    %v443 = vld [vmem:[#allocation6 + $0x210] sm:$0xff]
    %v444 = vld [vmem:[#allocation6 + $0x218] sm:$0xff]
    %v445 = vld [vmem:[#allocation8 + $0x4] sm:$0x1]
    %v446 = vlaneseq
    %v447 = vshrl.u32 %v446, 7
    %v448 = vsub.s32 0, %v447
    %v449 = vrot.slane %v445, %v448
    %450 = vmatprep.subr.mxu0 0.0
    %451 = vmatpush1.msra.mxu0 %v444
    %452 = vmatprep.subr.mxu0 0.0
    %453 = vmatpush1.msra.mxu0 %v443
    %454 = vmatprep.subr.mxu0 0.0
    %455 = vmatpush1.msra.mxu0 %v442
    %456 = vmatprep.subr.mxu0 0.0
    %457 = vmatpush1.msra.mxu0 %v441
    %458 = vmatprep.subr.mxu0 0.0
    %459 = vmatpush1.msra.mxu0 %v440
    %460 = vmatprep.subr.mxu0 0.0
    %461 = vmatpush1.msra.mxu0 %v439
    %462 = vmatprep.subr.mxu0 0.0
    %463 = vmatpush1.msra.mxu0 %v438
    %464 = vmatprep.subr.mxu0 0.0
    %465 = vmatpush1.msra.mxu0 %v437
    %466 = vmatprep.subr.mxu0 0.0
    %467 = vmatpush1.msra.mxu0 %v436
    %468 = vmatprep.subr.mxu0 0.0
    %469 = vmatpush1.msra.mxu0 %v435
    %470 = vmatprep.subr.mxu0 0.0
    %471 = vmatpush1.msra.mxu0 %v434
    %472 = vmatprep.subr.mxu0 0.0
    %473 = vmatpush1.msra.mxu0 %v433
    %474 = vmatprep.subr.mxu0 0.0
    %475 = vmatpush1.msra.mxu0 %v432
    %476 = vmatprep.subr.mxu0 0.0
    %477 = vmatpush1.msra.mxu0 %v431
    %478 = vmatprep.subr.mxu0 0.0
    %479 = vmatpush1.msra.mxu0 %v430
    %480 = vmatprep.subr.mxu0 0.0
    %481 = vmatpush1.msra.mxu0 %v429
    %482 = vmatprep.subr.mxu0 0.0
    %483 = vmatpush2.msra.mxu0 0.0
    %484 = vmatprep.subr.mxu0 0.0
    %485 = vmatpush2.msra.mxu0 0.0
    %486 = vmatprep.subr.mxu0 0.0
    %487 = vmatpush2.msra.mxu0 0.0
    %488 = vmatprep.subr.mxu0 0.0
    %489 = vmatpush2.msra.mxu0 0.0
    %490 = vmatprep.subr.mxu0 0.0
    %491 = vmatpush2.msra.mxu0 0.0
    %492 = vmatprep.subr.mxu0 0.0
    %493 = vmatpush2.msra.mxu0 0.0
    %494 = vmatprep.subr.mxu0 0.0
    %495 = vmatpush2.msra.mxu0 0.0
    %496 = vmatprep.subr.mxu0 0.0
    %497 = vmatpush2.msra.mxu0 0.0
    %498 = vmatprep.subr.mxu0 0.0
    %499 = vmatpush2.msra.mxu0 0.0
    %500 = vmatprep.subr.mxu0 0.0
    %501 = vmatpush2.msra.mxu0 0.0
    %502 = vmatprep.subr.mxu0 0.0
    %503 = vmatpush2.msra.mxu0 0.0
    %504 = vmatprep.subr.mxu0 0.0
    %505 = vmatpush2.msra.mxu0 0.0
    %506 = vmatprep.subr.mxu0 0.0
    %507 = vmatpush2.msra.mxu0 0.0
    %508 = vmatprep.subr.mxu0 0.0
    %509 = vmatpush2.msra.mxu0 0.0
    %510 = vmatprep.subr.mxu0 0.0
    %511 = vmatpush2.msra.mxu0 0.0
    %512 = vmatprep.subr.mxu0 0.0
    %513 = vmatpush2.msra.mxu0 0.0
    %514 = vmatprep.mubr.f32.mxu0 0.0
    %515 = vmatmul.mubr.f32.gmra.mxu0 %v428
    %v516 = vpop.f32.mrf.mxu0
    %v517 = vadd.f32 %v449, %v516
    %v518 = vpop.f32.mrf.mxu0
    %519 = vdwg.mxu0
    %v520 = vxor.u32 %v517, 2147483648
    %v521 = vmul.f32 %v520, 1.442695
    %v522 = vpow.pop %v521
    %v523 = vadd.f32 %v522, 1.0
    %v524 = vrcp.pop %v523
    %v525 = vmul.f32 1.0, %v524
    %v526 = vmax.f32 %v517, 0.0
    %v527 = vand.u32 2147483647, %v517
    %v528 = vsub.f32 0.0, %v527
    %v529 = vmul.f32 %v528, 1.442695
    %v530 = vpow.pop %v529
    %v531 = vadd.f32 %v530, 1.0
    %v532 = vlog2.pop %v531
    %v533 = vmul.f32 %v532, 0.6931472
    %v534 = vmul.f32 -0.5, %v530
    %v535 = vadd.f32 %v534, 1.0
    %v536 = vmul.f32 %v535, %v530
    %v537 = vand.u32 2147483647, %v530
    %vm538 = vcmp.lt.f32.partialorder %v537, 0.0004427343
    %v539 = vsel %vm538, %v536, %v533
    %v540 = vadd.f32 %v526, %v539
    %s541 = sld [smem:[#allocation9]]
    %s542 = sld [smem:[#allocation9 + $0x1]]
    %s543 = sld [smem:[#allocation9 + $0x2]]
    %v544 = vstv %s541
    %v545 = vmul.f32 %v544, %v525
    %v546 = vstv %s542
    %v547 = vmul.f32 %v546, %v540
    %549 = vrot.lane.b32.xlu0 %v547, 127
    %v550 = vpop.permute.xlu0 %549
    %v552 = vadd.f32 %v545, %v550
    %v553 = vstv %s543
    %v554 = vadd.f32 %v552, %v553
    %v555 = vxor.u32 %v554, 2147483648
    %v556 = vmul.f32 %v555, 1.442695
    %v557 = vpow.pop %v556
    %v558 = vadd.f32 %v557, 1.0
    %v559 = vrcp.pop %v558
    %v560 = vmul.f32 1.0, %v559
    %v561 = vlaneseq
    %v562 = vand.u32 %v561, 127
    %vm563 = vcmp.eq.s32.totalorder %v562, 0
    %vm564 = vcmp.eq.s32.totalorder %v562, 1
    %vm565 = vcmp.eq.s32.totalorder %v562, 2
    %567 = vset.pattern.permute.xlu0 0
    %568 = vperm.xlu0 %567, %v560
    %v569 = vpop.permute.xlu0 %568
    %v571 = vsel %vm565, %v569, 0.0
    %573 = vset.pattern.permute.xlu0 1
    %574 = vperm.xlu0 %573, %v540
    %v575 = vpop.permute.xlu0 %574
    %v577 = vsel %vm564, %v575, %v571
    %579 = vset.pattern.permute.xlu0 0
    %580 = vperm.xlu0 %579, %v525
    %v581 = vpop.permute.xlu0 %580
    %v583 = vsel %vm563, %v581, %v577
    %vm584 = vcmask 64512
    %585 = vst.msk [vmem:[#allocation10] sm:$0xff] %vm584, %v583
    // Predicated region
    $region34: #{tpu_custom_call.1} parent=1 // pred_check
      _
    $region35: #{tpu_custom_call.1} parent=1 // pred_check_branch
      %587 = sbr.rel (0) target = $region37
    $region36: #{tpu_custom_call.1} parent=1 // pred_region
      %s589 = ssub.s32 128, 128
      %590 = vsyncadd [#allocation4], %s589
      %s592 = sshll.u32 [#allocation10], 4
      %s593 = int_to_ptr.vmem [resolvable:$true] %s592
      %595 = dma.vmem_to_hbm [thread:$0]  %s593, 128, %s4, [#allocation4]
    $region37: #{tpu_custom_call.1} parent=1 // pred_fallthru
      _
    // Predicated region
    $region38: #{tpu_custom_call.1} parent=1 // pred_check
      _
    $region39: #{tpu_custom_call.1} parent=1 // pred_check_branch
      %597 = sbr.rel (0) target = $region41
    $region40: #{tpu_custom_call.1} parent=1 // pred_region
      %598 = dma.done [#allocation4], 128
    $region41: #{tpu_custom_call.1} parent=1 // pred_fallthru
      _
    %599 = vsyncpa [#allocation3], 1
    %600 = vsyncpa [#allocation7], 1
    %601 = vsyncpa [#allocation4], 1
    %602 = vsyncpa [#allocation5], 1

</llo_original>
